<compile_context>
chip_gen: v7x
topology: tpu7x:2x2x1
jax: 0.10.0
libtpu: 0.0.40
codegen_flags: <defaults>
</compile_context>

<pallas_src>
import jax
import jax.numpy as jnp
from jax.experimental import pallas as pl
from jax.experimental.pallas import tpu as pltpu


def _round_up(x: int, m: int) -> int:
    return ((x + m - 1) // m) * m


def _sublane_multiple(dtype) -> int:
    # (8, 128) tile for 32-bit; sub-32-bit dtypes pack along sublanes.
    return {4: 8, 2: 16, 1: 32}.get(jnp.dtype(dtype).itemsize, 8)


def _pad2d(a, rows: int, cols: int):
    r0, c0 = a.shape
    if (r0, c0) == (rows, cols):
        return a
    return jnp.zeros((rows, cols), a.dtype).at[:r0, :c0].set(a)


def _row_parallel_lora_kernel(x_ref, wt_ref, xa_ref, bt_ref, bias_ref,
                              o_ref, acc_ref):
    """One (i, j, k) grid step of y = x @ Wt + bias + xa @ Bt (xa precomputed)."""
    k = pl.program_id(2)

    @pl.when(k == 0)
    def _():
        acc_ref[...] = jnp.zeros_like(acc_ref)

    # Base path: MXU matmul, f32 accumulation straight into the scratch tile
    # (no named intermediate -> fewer VMEM stores per k step).
    acc_ref[...] += jnp.dot(x_ref[...], wt_ref[...],
                            preferred_element_type=jnp.float32)

    @pl.when(k == pl.num_programs(2) - 1)
    def _():
        # LoRA epilogue: xa = scaling * (x @ A^T) was precomputed in the
        # wrapper, so this (tm, rp) @ (rp, tn) matmul runs once per output
        # tile, not once per reduction step.
        lora = jnp.dot(xa_ref[...], bt_ref[...],
                       preferred_element_type=jnp.float32)
        # Bias add in f32, single cast at the store (lane-dense over N).
        o_ref[...] = (acc_ref[...] + lora + bias_ref[...]).astype(o_ref.dtype)


def row_parallel_linear(x, weight, lora_a, lora_b, bias, scaling, *,
                        tm=512, tn=512, tk=1024, compute_dtype=None):
    """x: [..., K]; weight: [N, K]; lora_a: [r, K]; lora_b: [N, r]; bias: [N] or None.

    compute_dtype: optional dtype (e.g. jnp.bfloat16) for the MXU inputs;
    accumulation stays f32, output keeps x.dtype.
    """
    *lead, K = x.shape
    N, K_w = weight.shape
    assert K_w == K
    r = 0 if lora_a is None else lora_a.shape[0]

    out_dtype = x.dtype
    cd = jnp.dtype(compute_dtype) if compute_dtype is not None else jnp.dtype(x.dtype)

    x2d = x.reshape(-1, K).astype(cd)
    M = x2d.shape[0]

    in_b = cd.itemsize
    out_b = jnp.dtype(out_dtype).itemsize
    sub = max(_sublane_multiple(cd), _sublane_multiple(out_dtype))

    rp = _round_up(max(r, 1), 128)  # LoRA rank padded to a full 128-lane vreg

    # Clamp tiles to the (aligned) problem size.
    tm = min(tm, _round_up(M, sub))
    tn = min(tn, _round_up(N, 128))
    tk = min(tk, _round_up(K, 128))

    # v7x megacore: if M fits in a single row tile (decode-like shape), split N
    # into >= 2 "parallel" j blocks so the second TensorCore gets work.
    # No effect on v5e/v6e (1 TC) beyond a slightly smaller tile.
    if M <= tm and N > 128:
        tn = min(tn, _round_up((N + 1) // 2, 128))

    # Keep the double-buffered footprint inside a cross-generation VMEM budget:
    # v7x has only 64 MiB physical VMEM (32 MiB default scoped limit).
    def _vmem(tm_, tn_, tk_):
        return (2 * (tm_ * tk_ + tk_ * tn_ + tm_ * rp + rp * tn_) * in_b
                + 2 * tn_ * 4                 # bias row (f32)
                + 2 * tm_ * tn_ * out_b       # output tile
                + tm_ * tn_ * 4)              # f32 accumulator scratch

    budget = 36 * 1024 * 1024
    while _vmem(tm, tn, tk) > budget and tk > 512:
        tk = _round_up(tk // 2, 128)
    while _vmem(tm, tn, tk) > budget and tn > 256:
        tn = _round_up(tn // 2, 128)
    while _vmem(tm, tn, tk) > budget and tm > sub:
        tm = _round_up(tm // 2, sub)

    Mp, Np, Kp = _round_up(M, tm), _round_up(N, tn), _round_up(K, tk)

    # Activation padding only when actually needed (common case: no copy).
    xp = _pad2d(x2d, Mp, Kp)

    # One-time weight layout prep. In a real model this block (transpose, pad,
    # cast) is hoisted to weight-load time; it is done here to stay
    # self-contained.
    wt = _pad2d(weight.T.astype(cd), Kp, Np)           # [Kp, Np]
    if r > 0:
        bt = _pad2d(lora_b.T.astype(cd), rp, Np)        # [rp, Np]
        a_t = _pad2d(lora_a.T.astype(cd), K, rp)        # [K, rp]
        # Tiny [M, rp] matmul (rank << K, N). `scaling` applied in f32 here so
        # it is never rounded through the weight dtype.
        xa = (jnp.dot(x2d, a_t, preferred_element_type=jnp.float32)
              * jnp.float32(scaling)).astype(cd)
        xa = _pad2d(xa, Mp, rp)                          # [Mp, rp]
    else:
        bt = jnp.zeros((rp, Np), cd)
        xa = jnp.zeros((Mp, rp), cd)
    if bias is None:
        bias_f32 = jnp.zeros((1, Np), jnp.float32)
    else:
        bias_f32 = jnp.zeros((1, Np), jnp.float32).at[0, :N].set(
            bias.astype(jnp.float32))

    grid = (Mp // tm, Np // tn, Kp // tk)

    flops = 2 * Mp * Np * Kp + 2 * Mp * rp * Np
    bytes_accessed = ((Mp * Kp + Kp * Np + Mp * rp + rp * Np) * in_b
                      + Np * 4 + Mp * Np * out_b)
    cost = pl.CostEstimate(flops=int(flops), transcendentals=0,
                           bytes_accessed=int(bytes_accessed))

    # Raise v5e's 16 MiB default scoped VMEM limit; stay well under v7x's
    # 64 MiB physical capacity.
    vmem_limit = int(min(48 * 1024 * 1024,
                         max(32 * 1024 * 1024,
                             _vmem(tm, tn, tk) + 8 * 1024 * 1024)))

    out_padded = pl.pallas_call(
        _row_parallel_lora_kernel,
        out_shape=jax.ShapeDtypeStruct((Mp, Np), out_dtype),
        grid_spec=pltpu.PrefetchScalarGridSpec(
            num_scalar_prefetch=0,
            grid=grid,
            in_specs=[
                pl.BlockSpec((tm, tk), lambda i, j, k: (i, k)),   # x tile
                # NOTE: if Kp//tk <= 3 and the profile shows exposed DMA, add
                # pipeline_mode=pl.Buffered(3) here (check v7x VMEM budget).
                pl.BlockSpec((tk, tn), lambda i, j, k: (k, j)),   # W^T tile
                pl.BlockSpec((tm, rp), lambda i, j, k: (i, 0)),   # xa (i-resident)
                pl.BlockSpec((rp, tn), lambda i, j, k: (0, j)),   # B^T tile
                pl.BlockSpec((1, tn),  lambda i, j, k: (0, j)),   # bias row (f32)
            ],
            out_specs=pl.BlockSpec((tm, tn), lambda i, j, k: (i, j)),
            scratch_shapes=[pltpu.VMEM((tm, tn), jnp.float32)],
        ),
        compiler_params=pltpu.CompilerParams(
            dimension_semantics=("parallel", "parallel", "arbitrary"),
            vmem_limit_bytes=vmem_limit),
        cost_estimate=cost,
    )(xp, wt, xa, bt, bias_f32)

    if (Mp, Np) != (M, N):
        out_padded = out_padded[:M, :N]
    return out_padded.reshape(*lead, N)


if __name__ == "__main__":
    # Small, deterministic synthetic setup consistent with the module.
    batch, seq = 2, 8
    input_size, output_size, lora_rank = 256, 128, 8
    lora_alpha = 16.0
    scaling = lora_alpha / lora_rank

    key = jax.random.PRNGKey(0)
    kx, kw, ka, kb, kbias = jax.random.split(key, 5)

    x = jax.random.normal(kx, (batch, seq, input_size), dtype=jnp.float32)
    weight = jax.random.normal(kw, (output_size, input_size), dtype=jnp.float32) * 0.02
    lora_a = jax.random.normal(ka, (lora_rank, input_size), dtype=jnp.float32) * 0.02
    # NOTE: the PyTorch module inits lora_b to zeros; use random values here so
    # the fused LoRA path is numerically exercised (synthetic weights).
    lora_b = jax.random.normal(kb, (output_size, lora_rank), dtype=jnp.float32) * 0.02
    bias = jax.random.normal(kbias, (output_size,), dtype=jnp.float32) * 0.1

    # Reference (plain JAX) — same math as the PyTorch eval forward.
    y_ref = (x @ weight.T + bias) + scaling * ((x @ lora_a.T) @ lora_b.T)

    # f32 end-to-end path.
    y = jax.block_until_ready(
        row_parallel_linear(x, weight, lora_a, lora_b, bias, scaling))
    assert y.shape == (batch, seq, output_size)
    assert jnp.allclose(y, y_ref, atol=2e-3, rtol=2e-3), \
        float(jnp.max(jnp.abs(y - y_ref)))

    # bf16 MXU path (inputs/weights cast once at prep time, f32 accumulation).
    y_bf16 = jax.block_until_ready(
        row_parallel_linear(x, weight, lora_a, lora_b, bias, scaling,
                            compute_dtype=jnp.bfloat16))
    assert y_bf16.shape == (batch, seq, output_size)
    assert jnp.allclose(y_bf16, y_ref, atol=5e-2, rtol=5e-2)

    # TODO(synk): tp_size > 1 all-reduce (dist.all_reduce) is a no-op here; a
    # multi-chip version would use pltpu.make_async_remote_copy + semaphores.
    print("KERNEL_OK")
</pallas_src>

<mosaic_0001>
module attributes {stable_mosaic.version = 11 : i64} {
  func.func @_row_parallel_lora_kernel(%arg0: i32, %arg1: i32, %arg2: i32, %arg3: memref<16x256xf32, #tpu.memory_space<vmem>>, %arg4: memref<256x128xf32, #tpu.memory_space<vmem>>, %arg5: memref<16x128xf32, #tpu.memory_space<vmem>>, %arg6: memref<128x128xf32, #tpu.memory_space<vmem>>, %arg7: memref<1x128xf32, #tpu.memory_space<vmem>>, %arg8: memref<16x128xf32, #tpu.memory_space<vmem>>, %arg9: memref<16x128xf32, #tpu.memory_space<vmem>>) attributes {dimension_semantics = [#tpu.dimension_semantics<parallel>, #tpu.dimension_semantics<parallel>, #tpu.dimension_semantics<arbitrary>], iteration_bounds = array<i64: 1, 1, 1>, scalar_prefetch = 0 : i64, scratch_operands = 1 : i64, tpu.core_type = #tpu.core_type<tc>, window_params = [{transform_indices = @transform_0, window_bounds = array<i64: 16, 256>}, {transform_indices = @transform_1, window_bounds = array<i64: 256, 128>}, {transform_indices = @transform_2, window_bounds = array<i64: 16, 128>}, {transform_indices = @transform_3, window_bounds = array<i64: 128, 128>}, {transform_indices = @transform_4, window_bounds = array<i64: 1, 128>}, {transform_indices = @transform_5, window_bounds = array<i64: 16, 128>}]} {
    %c0_i32 = arith.constant 0 : i32
    %0 = arith.cmpi eq, %arg2, %c0_i32 : i32
    %1 = arith.extui %0 : i1 to i32
    %c0_i32_0 = arith.constant 0 : i32
    %2 = arith.cmpi ne, %1, %c0_i32_0 : i32
    scf.if %2 {
      %cst_10 = arith.constant 0.000000e+00 : f32
      %12 = vector.broadcast %cst_10 : f32 to vector<16x128xf32>
      %c0_11 = arith.constant 0 : index
      %c0_12 = arith.constant 0 : index
      %13 = vector.load %arg9[%c0_11, %c0_12] : memref<16x128xf32, #tpu.memory_space<vmem>>, vector<16x128xf32>
      tpu.vector_store %arg9[%c0_11, %c0_12], %12 {strides = array<i32>} : memref<16x128xf32, #tpu.memory_space<vmem>>, vector<16x128xf32>,
    } else {
    }
    %c0 = arith.constant 0 : index
    %c0_1 = arith.constant 0 : index
    %3 = vector.load %arg9[%c0, %c0_1] : memref<16x128xf32, #tpu.memory_space<vmem>>, vector<16x128xf32>
    %c0_2 = arith.constant 0 : index
    %c0_3 = arith.constant 0 : index
    %4 = vector.load %arg3[%c0_2, %c0_3] : memref<16x256xf32, #tpu.memory_space<vmem>>, vector<16x256xf32>
    %c0_4 = arith.constant 0 : index
    %c0_5 = arith.constant 0 : index
    %5 = vector.load %arg4[%c0_4, %c0_5] : memref<256x128xf32, #tpu.memory_space<vmem>>, vector<256x128xf32>
    %cst = arith.constant dense<0.000000e+00> : vector<16x128xf32>
    %6 = tpu.matmul %4, %5, %cst {dimension_numbers = #tpu.dot_dimension_numbers<[1], [0], [0], [1], [0, 0, 1, 1], [], []>} : vector<16x256xf32>, vector<256x128xf32>, vector<16x128xf32> -> vector<16x128xf32>
    %7 = arith.addf %3, %6 : vector<16x128xf32>
    %c0_6 = arith.constant 0 : index
    %c0_7 = arith.constant 0 : index
    %8 = vector.load %arg9[%c0_6, %c0_7] : memref<16x128xf32, #tpu.memory_space<vmem>>, vector<16x128xf32>
    tpu.vector_store %arg9[%c0_6, %c0_7], %7 {strides = array<i32>} : memref<16x128xf32, #tpu.memory_space<vmem>>, vector<16x128xf32>,
    %c0_i32_8 = arith.constant 0 : i32
    %9 = arith.cmpi eq, %arg2, %c0_i32_8 : i32
    %10 = arith.extui %9 : i1 to i32
    %c0_i32_9 = arith.constant 0 : i32
    %11 = arith.cmpi ne, %10, %c0_i32_9 : i32
    scf.if %11 {
      %c0_10 = arith.constant 0 : index
      %c0_11 = arith.constant 0 : index
      %12 = vector.load %arg5[%c0_10, %c0_11] : memref<16x128xf32, #tpu.memory_space<vmem>>, vector<16x128xf32>
      %c0_12 = arith.constant 0 : index
      %c0_13 = arith.constant 0 : index
      %13 = vector.load %arg6[%c0_12, %c0_13] : memref<128x128xf32, #tpu.memory_space<vmem>>, vector<128x128xf32>
      %cst_14 = arith.constant dense<0.000000e+00> : vector<16x128xf32>
      %14 = tpu.matmul %12, %13, %cst_14 {dimension_numbers = #tpu.dot_dimension_numbers<[1], [0], [0], [1], [0, 0, 1, 1], [], []>} : vector<16x128xf32>, vector<128x128xf32>, vector<16x128xf32> -> vector<16x128xf32>
      %c0_15 = arith.constant 0 : index
      %c0_16 = arith.constant 0 : index
      %15 = vector.load %arg9[%c0_15, %c0_16] : memref<16x128xf32, #tpu.memory_space<vmem>>, vector<16x128xf32>
      %16 = arith.addf %15, %14 : vector<16x128xf32>
      %c0_17 = arith.constant 0 : index
      %c0_18 = arith.constant 0 : index
      %17 = vector.load %arg7[%c0_17, %c0_18] : memref<1x128xf32, #tpu.memory_space<vmem>>, vector<1x128xf32>
      %18 = vector.broadcast %17 : vector<1x128xf32> to vector<16x128xf32>
      %19 = arith.addf %16, %18 : vector<16x128xf32>
      %c0_19 = arith.constant 0 : index
      %c0_20 = arith.constant 0 : index
      %20 = vector.load %arg8[%c0_19, %c0_20] : memref<16x128xf32, #tpu.memory_space<vmem>>, vector<16x128xf32>
      tpu.vector_store %arg8[%c0_19, %c0_20], %19 {strides = array<i32>} : memref<16x128xf32, #tpu.memory_space<vmem>>, vector<16x128xf32>,
    } else {
    }
    return
  }
  func.func @transform_0(%arg0: i32, %arg1: i32, %arg2: i32) -> (i32, i32) {
    %c0_i32 = arith.constant 0 : i32
    return %arg0, %arg2 : i32, i32
  }
  func.func @transform_1(%arg0: i32, %arg1: i32, %arg2: i32) -> (i32, i32) {
    %c0_i32 = arith.constant 0 : i32
    return %arg2, %arg1 : i32, i32
  }
  func.func @transform_2(%arg0: i32, %arg1: i32, %arg2: i32) -> (i32, i32) {
    %c0_i32 = arith.constant 0 : i32
    %c0_i32_0 = arith.constant 0 : i32
    return %arg0, %c0_i32 : i32, i32
  }
  func.func @transform_3(%arg0: i32, %arg1: i32, %arg2: i32) -> (i32, i32) {
    %c0_i32 = arith.constant 0 : i32
    %c0_i32_0 = arith.constant 0 : i32
    return %c0_i32, %arg1 : i32, i32
  }
  func.func @transform_4(%arg0: i32, %arg1: i32, %arg2: i32) -> (i32, i32) {
    %c0_i32 = arith.constant 0 : i32
    %c0_i32_0 = arith.constant 0 : i32
    return %c0_i32, %arg1 : i32, i32
  }
  func.func @transform_5(%arg0: i32, %arg1: i32, %arg2: i32) -> (i32, i32) {
    %c0_i32 = arith.constant 0 : i32
    return %arg0, %arg1 : i32, i32
  }
}

</mosaic_0001>

<llo_original>
// kernel: tpu_custom_call.1
$region0: #{tpu_custom_call.1}
  #allocation0 [shape = 'u32[]', space=smem, size = 0x4, offset = 0x4, fixed_abs, tag = 'smem constant byte address 0x4 - core index']
  #allocation1 [shape = 'u32[144,128]{1,0:T(1,128)}', space=vmem, size = 0x12000, scoped, tag = 'internal scratch']
  #allocation2 [shape = 'f32[16,128]{1,0:T(8,128)}', space=vmem, size = 0x2000, scoped, tag = 'scratch operand']
  %s0 = inlined_call_operand.hbm [shape: f32[16,256], index: 0, kind: input, shape index: {}]
  %s1 = inlined_call_operand.hbm [shape: f32[256,128], index: 1, kind: input, shape index: {}]
  %s2 = inlined_call_operand.hbm [shape: f32[16,128], index: 2, kind: input, shape index: {}]
  %s3 = inlined_call_operand.hbm [shape: f32[128,128], index: 3, kind: input, shape index: {}]
  %s4 = inlined_call_operand.vmem [shape: f32[1,128], index: 4, kind: input, shape index: {}]
  %s5 = inlined_call_operand.hbm [shape: f32[16,128], index: 5, kind: output, shape index: {}]
  %s6 = sld [smem:[#allocation0]]
  $region54: #{tpu_custom_call.1} parent=0
    _
  %s8 = ssub.s32 1, %s6
  %s9 = scalar_select 0, %s8, %s6
  $region1: #{tpu_custom_call.1} parent=0
    #allocation3 [shape = 'u8[16384]{0}', space=vmem, size = 0x4000, scoped, tag = 'input window, operand 0, single buffered']
    #allocation4 [shape = 's32[1]{0}', space=sflag, size = 0x4, scoped, tag = 'scoped memory for tpu_custom_call.1']
    #allocation5 [shape = 's32[1]{0}', space=sflag, size = 0x4, scoped, tag = 'scoped memory for tpu_custom_call.1']
    #allocation6 [shape = 'u8[131072]{0}', space=vmem, size = 0x20000, scoped, tag = 'input window, operand 1, single buffered']
    #allocation7 [shape = 's32[1]{0}', space=sflag, size = 0x4, scoped, tag = 'scoped memory for tpu_custom_call.1']
    #allocation8 [shape = 'u8[8192]{0}', space=vmem, size = 0x2000, scoped, tag = 'input window, operand 2, single buffered']
    #allocation9 [shape = 'u8[65536]{0}', space=vmem, size = 0x10000, scoped, tag = 'input window, operand 3, single buffered']
    #allocation10 [shape = 's32[1]{0}', space=sflag, size = 0x4, scoped, tag = 'scoped memory for tpu_custom_call.1']
    #allocation11 [shape = 'u8[8192]{0}', space=vmem, size = 0x2000, scoped, tag = 'output window, operand 0, single buffered']
    %10 = vsyncpa [#allocation4], 0
    %11 = vsyncpa [#allocation7], 0
    %12 = vsyncpa [#allocation10], 0
    %13 = vsyncpa [#allocation5], 0
    // Predicated region
    $region2: #{tpu_custom_call.1} parent=1 // pred_check
      _
    $region3: #{tpu_custom_call.1} parent=1 // pred_check_branch
      %15 = sbr.rel (0) target = $region5
    $region4: #{tpu_custom_call.1} parent=1 // pred_region
      %s17 = ssub.s32 512, 512
      %18 = vsyncadd [#allocation4], %s17
      %s19 = sshll.u32 [#allocation3], 4
      %s20 = int_to_ptr.vmem [resolvable:$true] %s19
      %25 = dma.hbm_to_vmem [thread:$0]  %s0, 512, %s20, [#allocation4], 256, 256, 16
    $region5: #{tpu_custom_call.1} parent=1 // pred_fallthru
      _
    // Predicated region
    $region6: #{tpu_custom_call.1} parent=1 // pred_check
      _
    $region7: #{tpu_custom_call.1} parent=1 // pred_check_branch
      %27 = sbr.rel (0) target = $region9
    $region8: #{tpu_custom_call.1} parent=1 // pred_region
      %s29 = ssub.s32 4096, 4096
      %30 = vsyncadd [#allocation7], %s29
      %s31 = sshll.u32 [#allocation6], 4
      %s32 = int_to_ptr.vmem [resolvable:$true] %s31
      %37 = dma.hbm_to_vmem [thread:$0]  %s1, 4096, %s32, [#allocation7], 128, 128, 8
    $region9: #{tpu_custom_call.1} parent=1 // pred_fallthru
      _
    // Predicated region
    $region10: #{tpu_custom_call.1} parent=1 // pred_check
      _
    $region11: #{tpu_custom_call.1} parent=1 // pred_check_branch
      %39 = sbr.rel (0) target = $region13
    $region12: #{tpu_custom_call.1} parent=1 // pred_region
      %s41 = ssub.s32 256, 256
      %42 = vsyncadd [#allocation7], %s41
      %s43 = sshll.u32 [#allocation8], 4
      %s44 = int_to_ptr.vmem [resolvable:$true] %s43
      %49 = dma.hbm_to_vmem [thread:$0]  %s2, 256, %s44, [#allocation7], 128, 128, 8
    $region13: #{tpu_custom_call.1} parent=1 // pred_fallthru
      _
    // Predicated region
    $region14: #{tpu_custom_call.1} parent=1 // pred_check
      _
    $region15: #{tpu_custom_call.1} parent=1 // pred_check_branch
      %51 = sbr.rel (0) target = $region17
    $region16: #{tpu_custom_call.1} parent=1 // pred_region
      %s53 = ssub.s32 2048, 2048
      %54 = vsyncadd [#allocation10], %s53
      %s55 = sshll.u32 [#allocation9], 4
      %s56 = int_to_ptr.vmem [resolvable:$true] %s55
      %61 = dma.hbm_to_vmem [thread:$0]  %s3, 2048, %s56, [#allocation10], 128, 128, 8
    $region17: #{tpu_custom_call.1} parent=1 // pred_fallthru
      _
    // Predicated region
    $region18: #{tpu_custom_call.1} parent=1 // pred_check
      _
    $region19: #{tpu_custom_call.1} parent=1 // pred_check_branch
      %63 = sbr.rel (0) target = $region21
    $region20: #{tpu_custom_call.1} parent=1 // pred_region
      _
    $region21: #{tpu_custom_call.1} parent=1 // pred_fallthru
      _
    // Predicated region
    $region22: #{tpu_custom_call.1} parent=1 // pred_check
      _
    $region23: #{tpu_custom_call.1} parent=1 // pred_check_branch
      %65 = sbr.rel (0) target = $region25
    $region24: #{tpu_custom_call.1} parent=1 // pred_region
      %66 = dma.done [#allocation4], 512
    $region25: #{tpu_custom_call.1} parent=1 // pred_fallthru
      _
    // Predicated region
    $region26: #{tpu_custom_call.1} parent=1 // pred_check
      _
    $region27: #{tpu_custom_call.1} parent=1 // pred_check_branch
      %68 = sbr.rel (0) target = $region29
    $region28: #{tpu_custom_call.1} parent=1 // pred_region
      %69 = dma.done [#allocation7], 4096
    $region29: #{tpu_custom_call.1} parent=1 // pred_fallthru
      _
    // Predicated region
    $region30: #{tpu_custom_call.1} parent=1 // pred_check
      _
    $region31: #{tpu_custom_call.1} parent=1 // pred_check_branch
      %71 = sbr.rel (0) target = $region33
    $region32: #{tpu_custom_call.1} parent=1 // pred_region
      %72 = dma.done [#allocation7], 256
    $region33: #{tpu_custom_call.1} parent=1 // pred_fallthru
      _
    // Predicated region
    $region34: #{tpu_custom_call.1} parent=1 // pred_check
      _
    $region35: #{tpu_custom_call.1} parent=1 // pred_check_branch
      %74 = sbr.rel (0) target = $region37
    $region36: #{tpu_custom_call.1} parent=1 // pred_region
      %75 = dma.done [#allocation10], 2048
    $region37: #{tpu_custom_call.1} parent=1 // pred_fallthru
      _
    %p76 = scmp.eq.s32.totalorder 0, 0
    // Predicated region
    $region38: #{tpu_custom_call.1} parent=1 // pred_check
      %p77 = pneg %p76
    $region39: #{tpu_custom_call.1} parent=1 // pred_check_branch
      %79 = sbr.rel (%p77) target = $region41
    $region40: #{tpu_custom_call.1} parent=1 // pred_region
      %80 = vst [vmem:[#allocation2] sm:$0xff] 0.0
      %81 = vst [vmem:[#allocation2 + $0x8] sm:$0xff] 0.0
    $region41: #{tpu_custom_call.1} parent=1 // pred_fallthru
      _
    %v82 = vld [vmem:[#allocation2] sm:$0xff]
    %v83 = vld [vmem:[#allocation2 + $0x8] sm:$0xff]
    %v84 = vld [vmem:[#allocation3] sm:$0xff]
    %v85 = vld [vmem:[#allocation3 + $0x8] sm:$0xff]
    %v86 = vld [vmem:[#allocation3 + $0x10] sm:$0xff]
    %v87 = vld [vmem:[#allocation3 + $0x18] sm:$0xff]
    %v88 = vld [vmem:[#allocation6] sm:$0xff]
    %v89 = vld [vmem:[#allocation6 + $0x8] sm:$0xff]
    %v90 = vld [vmem:[#allocation6 + $0x10] sm:$0xff]
    %v91 = vld [vmem:[#allocation6 + $0x18] sm:$0xff]
    %v92 = vld [vmem:[#allocation6 + $0x20] sm:$0xff]
    %v93 = vld [vmem:[#allocation6 + $0x28] sm:$0xff]
    %v94 = vld [vmem:[#allocation6 + $0x30] sm:$0xff]
    %v95 = vld [vmem:[#allocation6 + $0x38] sm:$0xff]
    %v96 = vld [vmem:[#allocation6 + $0x40] sm:$0xff]
    %v97 = vld [vmem:[#allocation6 + $0x48] sm:$0xff]
    %v98 = vld [vmem:[#allocation6 + $0x50] sm:$0xff]
    %v99 = vld [vmem:[#allocation6 + $0x58] sm:$0xff]
    %v100 = vld [vmem:[#allocation6 + $0x60] sm:$0xff]
    %v101 = vld [vmem:[#allocation6 + $0x68] sm:$0xff]
    %v102 = vld [vmem:[#allocation6 + $0x70] sm:$0xff]
    %v103 = vld [vmem:[#allocation6 + $0x78] sm:$0xff]
    %v104 = vld [vmem:[#allocation6 + $0x80] sm:$0xff]
    %v105 = vld [vmem:[#allocation6 + $0x88] sm:$0xff]
    %v106 = vld [vmem:[#allocation6 + $0x90] sm:$0xff]
    %v107 = vld [vmem:[#allocation6 + $0x98] sm:$0xff]
    %v108 = vld [vmem:[#allocation6 + $0xa0] sm:$0xff]
    %v109 = vld [vmem:[#allocation6 + $0xa8] sm:$0xff]
    %v110 = vld [vmem:[#allocation6 + $0xb0] sm:$0xff]
    %v111 = vld [vmem:[#allocation6 + $0xb8] sm:$0xff]
    %v112 = vld [vmem:[#allocation6 + $0xc0] sm:$0xff]
    %v113 = vld [vmem:[#allocation6 + $0xc8] sm:$0xff]
    %v114 = vld [vmem:[#allocation6 + $0xd0] sm:$0xff]
    %v115 = vld [vmem:[#allocation6 + $0xd8] sm:$0xff]
    %v116 = vld [vmem:[#allocation6 + $0xe0] sm:$0xff]
    %v117 = vld [vmem:[#allocation6 + $0xe8] sm:$0xff]
    %v118 = vld [vmem:[#allocation6 + $0xf0] sm:$0xff]
    %v119 = vld [vmem:[#allocation6 + $0xf8] sm:$0xff]
    %120 = vmatprep.subr.mxu0 0.0
    %121 = vmatpush1.msra.mxu0 %v88
    %122 = vmatprep.subr.mxu0 0.0
    %123 = vmatpush1.msra.mxu0 %v89
    %124 = vmatprep.subr.mxu0 0.0
    %125 = vmatpush1.msra.mxu0 %v90
    %126 = vmatprep.subr.mxu0 0.0
    %127 = vmatpush1.msra.mxu0 %v91
    %128 = vmatprep.subr.mxu0 0.0
    %129 = vmatpush1.msra.mxu0 %v92
    %130 = vmatprep.subr.mxu0 0.0
    %131 = vmatpush1.msra.mxu0 %v93
    %132 = vmatprep.subr.mxu0 0.0
    %133 = vmatpush1.msra.mxu0 %v94
    %134 = vmatprep.subr.mxu0 0.0
    %135 = vmatpush1.msra.mxu0 %v95
    %136 = vmatprep.subr.mxu0 0.0
    %137 = vmatpush1.msra.mxu0 %v96
    %138 = vmatprep.subr.mxu0 0.0
    %139 = vmatpush1.msra.mxu0 %v97
    %140 = vmatprep.subr.mxu0 0.0
    %141 = vmatpush1.msra.mxu0 %v98
    %142 = vmatprep.subr.mxu0 0.0
    %143 = vmatpush1.msra.mxu0 %v99
    %144 = vmatprep.subr.mxu0 0.0
    %145 = vmatpush1.msra.mxu0 %v100
    %146 = vmatprep.subr.mxu0 0.0
    %147 = vmatpush1.msra.mxu0 %v101
    %148 = vmatprep.subr.mxu0 0.0
    %149 = vmatpush1.msra.mxu0 %v102
    %150 = vmatprep.subr.mxu0 0.0
    %151 = vmatpush1.msra.mxu0 %v103
    %152 = vmatprep.subr.mxu0 0.0
    %153 = vmatpush1.msra.mxu0 %v104
    %154 = vmatprep.subr.mxu0 0.0
    %155 = vmatpush1.msra.mxu0 %v105
    %156 = vmatprep.subr.mxu0 0.0
    %157 = vmatpush1.msra.mxu0 %v106
    %158 = vmatprep.subr.mxu0 0.0
    %159 = vmatpush1.msra.mxu0 %v107
    %160 = vmatprep.subr.mxu0 0.0
    %161 = vmatpush1.msra.mxu0 %v108
    %162 = vmatprep.subr.mxu0 0.0
    %163 = vmatpush1.msra.mxu0 %v109
    %164 = vmatprep.subr.mxu0 0.0
    %165 = vmatpush1.msra.mxu0 %v110
    %166 = vmatprep.subr.mxu0 0.0
    %167 = vmatpush1.msra.mxu0 %v111
    %168 = vmatprep.subr.mxu0 0.0
    %169 = vmatpush1.msra.mxu0 %v112
    %170 = vmatprep.subr.mxu0 0.0
    %171 = vmatpush1.msra.mxu0 %v113
    %172 = vmatprep.subr.mxu0 0.0
    %173 = vmatpush1.msra.mxu0 %v114
    %174 = vmatprep.subr.mxu0 0.0
    %175 = vmatpush1.msra.mxu0 %v115
    %176 = vmatprep.subr.mxu0 0.0
    %177 = vmatpush1.msra.mxu0 %v116
    %178 = vmatprep.subr.mxu0 0.0
    %179 = vmatpush1.msra.mxu0 %v117
    %180 = vmatprep.subr.mxu0 0.0
    %181 = vmatpush1.msra.mxu0 %v118
    %182 = vmatprep.subr.mxu0 0.0
    %183 = vmatpush1.msra.mxu0 %v119
    %184 = vmatprep.mubr.f32.mxu0 %v85
    %185 = vmatmul.mubr.f32.gmra.mrb[0].mxu0 %v84
    %v186 = vpop.f32.mrb[0].mxu0
    %v187 = vadd.f32 0.0, %v186
    %v188 = vpop.f32.mrb[0].mxu0
    %189 = vmatprep.mubr.f32.mxu0 %v87
    %190 = vmatmul.mubr.f32.gmra.mrb[0].mxu0 %v86
    %v191 = vpop.f32.mrb[0].mxu0
    %v192 = vadd.f32 0.0, %v191
    %v193 = vpop.f32.mrb[0].mxu0
    %194 = vdwg.mxu0
    %v195 = vadd.f32 %v82, %v187
    %v196 = vadd.f32 %v83, %v192
    %197 = vst [vmem:[#allocation2] sm:$0xff] %v195
    %198 = vst [vmem:[#allocation2 + $0x8] sm:$0xff] %v196
    // Predicated region
    $region42: #{tpu_custom_call.1} parent=1 // pred_check
      %p199 = pneg %p76
    $region43: #{tpu_custom_call.1} parent=1 // pred_check_branch
      %201 = sbr.rel (%p199) target = $region45
    $region44: #{tpu_custom_call.1} parent=1 // pred_region
      %v202 = vld [vmem:[#allocation8] sm:$0xff]
      %v203 = vld [vmem:[#allocation8 + $0x8] sm:$0xff]
      %v204 = vld [vmem:[#allocation9] sm:$0xff]
      %v205 = vld [vmem:[#allocation9 + $0x8] sm:$0xff]
      %v206 = vld [vmem:[#allocation9 + $0x10] sm:$0xff]
      %v207 = vld [vmem:[#allocation9 + $0x18] sm:$0xff]
      %v208 = vld [vmem:[#allocation9 + $0x20] sm:$0xff]
      %v209 = vld [vmem:[#allocation9 + $0x28] sm:$0xff]
      %v210 = vld [vmem:[#allocation9 + $0x30] sm:$0xff]
      %v211 = vld [vmem:[#allocation9 + $0x38] sm:$0xff]
      %v212 = vld [vmem:[#allocation9 + $0x40] sm:$0xff]
      %v213 = vld [vmem:[#allocation9 + $0x48] sm:$0xff]
      %v214 = vld [vmem:[#allocation9 + $0x50] sm:$0xff]
      %v215 = vld [vmem:[#allocation9 + $0x58] sm:$0xff]
      %v216 = vld [vmem:[#allocation9 + $0x60] sm:$0xff]
      %v217 = vld [vmem:[#allocation9 + $0x68] sm:$0xff]
      %v218 = vld [vmem:[#allocation9 + $0x70] sm:$0xff]
      %v219 = vld [vmem:[#allocation9 + $0x78] sm:$0xff]
      %220 = vmatprep.subr.mxu0 0.0
      %221 = vmatpush1.msra.mxu0 %v204
      %222 = vmatprep.subr.mxu0 0.0
      %223 = vmatpush1.msra.mxu0 %v205
      %224 = vmatprep.subr.mxu0 0.0
      %225 = vmatpush1.msra.mxu0 %v206
      %226 = vmatprep.subr.mxu0 0.0
      %227 = vmatpush1.msra.mxu0 %v207
      %228 = vmatprep.subr.mxu0 0.0
      %229 = vmatpush1.msra.mxu0 %v208
      %230 = vmatprep.subr.mxu0 0.0
      %231 = vmatpush1.msra.mxu0 %v209
      %232 = vmatprep.subr.mxu0 0.0
      %233 = vmatpush1.msra.mxu0 %v210
      %234 = vmatprep.subr.mxu0 0.0
      %235 = vmatpush1.msra.mxu0 %v211
      %236 = vmatprep.subr.mxu0 0.0
      %237 = vmatpush1.msra.mxu0 %v212
      %238 = vmatprep.subr.mxu0 0.0
      %239 = vmatpush1.msra.mxu0 %v213
      %240 = vmatprep.subr.mxu0 0.0
      %241 = vmatpush1.msra.mxu0 %v214
      %242 = vmatprep.subr.mxu0 0.0
      %243 = vmatpush1.msra.mxu0 %v215
      %244 = vmatprep.subr.mxu0 0.0
      %245 = vmatpush1.msra.mxu0 %v216
      %246 = vmatprep.subr.mxu0 0.0
      %247 = vmatpush1.msra.mxu0 %v217
      %248 = vmatprep.subr.mxu0 0.0
      %249 = vmatpush1.msra.mxu0 %v218
      %250 = vmatprep.subr.mxu0 0.0
      %251 = vmatpush1.msra.mxu0 %v219
      %252 = vmatprep.subr.mxu0 0.0
      %253 = vmatpush1.msra.mxu0 0.0
      %254 = vmatprep.subr.mxu0 0.0
      %255 = vmatpush1.msra.mxu0 0.0
      %256 = vmatprep.subr.mxu0 0.0
      %257 = vmatpush1.msra.mxu0 0.0
      %258 = vmatprep.subr.mxu0 0.0
      %259 = vmatpush1.msra.mxu0 0.0
      %260 = vmatprep.subr.mxu0 0.0
      %261 = vmatpush1.msra.mxu0 0.0
      %262 = vmatprep.subr.mxu0 0.0
      %263 = vmatpush1.msra.mxu0 0.0
      %264 = vmatprep.subr.mxu0 0.0
      %265 = vmatpush1.msra.mxu0 0.0
      %266 = vmatprep.subr.mxu0 0.0
      %267 = vmatpush1.msra.mxu0 0.0
      %268 = vmatprep.subr.mxu0 0.0
      %269 = vmatpush1.msra.mxu0 0.0
      %270 = vmatprep.subr.mxu0 0.0
      %271 = vmatpush1.msra.mxu0 0.0
      %272 = vmatprep.subr.mxu0 0.0
      %273 = vmatpush1.msra.mxu0 0.0
      %274 = vmatprep.subr.mxu0 0.0
      %275 = vmatpush1.msra.mxu0 0.0
      %276 = vmatprep.subr.mxu0 0.0
      %277 = vmatpush1.msra.mxu0 0.0
      %278 = vmatprep.subr.mxu0 0.0
      %279 = vmatpush1.msra.mxu0 0.0
      %280 = vmatprep.subr.mxu0 0.0
      %281 = vmatpush1.msra.mxu0 0.0
      %282 = vmatprep.subr.mxu0 0.0
      %283 = vmatpush1.msra.mxu0 0.0
      %284 = vmatprep.mubr.f32.mxu0 0.0
      %285 = vmatmul.mubr.f32.gmra.mrb[0].mxu0 %v202
      %v286 = vpop.f32.mrb[0].mxu0
      %v287 = vadd.f32 0.0, %v286
      %v288 = vpop.f32.mrb[0].mxu0
      %289 = vmatprep.mubr.f32.mxu0 0.0
      %290 = vmatmul.mubr.f32.gmra.mrb[0].mxu0 %v203
      %v291 = vpop.f32.mrb[0].mxu0
      %v292 = vadd.f32 0.0, %v291
      %v293 = vpop.f32.mrb[0].mxu0
      %294 = vdwg.mxu0
      %v295 = vld [vmem:[#allocation2] sm:$0xff]
      %v296 = vld [vmem:[#allocation2 + $0x8] sm:$0xff]
      %v297 = vadd.f32 %v295, %v287
      %v298 = vadd.f32 %v296, %v292
      %v299 = vld [vmem:[%s4] sm:$0x1]
      %v301 = vlaneseq
      %v302 = vshrl.u32 %v301, 7
      %v303 = vsub.s32 0, %v302
      %v304 = vrot.slane %v299, %v303
      %v306 = vadd.f32 %v297, %v304
      %v307 = vadd.f32 %v298, %v304
      %308 = vst [vmem:[#allocation11] sm:$0xff] %v306
      %309 = vst [vmem:[#allocation11 + $0x8] sm:$0xff] %v307
    $region45: #{tpu_custom_call.1} parent=1 // pred_fallthru
      _
    // Predicated region
    $region46: #{tpu_custom_call.1} parent=1 // pred_check
      _
    $region47: #{tpu_custom_call.1} parent=1 // pred_check_branch
      %311 = sbr.rel (0) target = $region49
    $region48: #{tpu_custom_call.1} parent=1 // pred_region
      %s313 = ssub.s32 256, 256
      %314 = vsyncadd [#allocation5], %s313
      %s315 = sshll.u32 [#allocation11], 4
      %s316 = int_to_ptr.vmem [resolvable:$true] %s315
      %321 = dma.vmem_to_hbm [thread:$0]  %s316, 256, %s5, [#allocation5], 128, 128, 8
    $region49: #{tpu_custom_call.1} parent=1 // pred_fallthru
      _
    // Predicated region
    $region50: #{tpu_custom_call.1} parent=1 // pred_check
      _
    $region51: #{tpu_custom_call.1} parent=1 // pred_check_branch
      %323 = sbr.rel (0) target = $region53
    $region52: #{tpu_custom_call.1} parent=1 // pred_region
      %324 = dma.done [#allocation5], 256
    $region53: #{tpu_custom_call.1} parent=1 // pred_fallthru
      _
    %325 = vsyncpa [#allocation4], 1
    %326 = vsyncpa [#allocation7], 1
    %327 = vsyncpa [#allocation10], 1
    %328 = vsyncpa [#allocation5], 1

</llo_original>
